<compile_context>
chip_gen: v7x
topology: tpu7x:2x2x1
jax: 0.10.0
libtpu: 0.0.40
codegen_flags: <defaults>
</compile_context>

<pallas_src>
import functools

import jax
import jax.numpy as jnp
from jax.experimental import pallas as pl
from jax.experimental.pallas import tpu as pltpu


def _round_up(x, m):
    return ((x + m - 1) // m) * m


def lstm_classifier_kernel(gx_ref, len_ref, whh_ref, wfc_ref, bfc_ref, out_ref,
                           h_ref, c_ref, *, ts, unroll):
    """One time-block of the LSTM recurrence.

    gx_ref:  (Ts, Bp, Gw) bf16  precomputed x_t @ W_ih^T + (b_ih + b_hh)
    len_ref: (Bp, 1)      i32   sequence lengths (padded rows = 0)
    whh_ref: (Hs, Gw)     bf16  W_hh^T (gate g occupies columns [g*Hs, g*Hs+Hs))
    wfc_ref: (Hs, Op)     bf16  W_fc^T
    bfc_ref: (1, Op)      f32
    out_ref: (Bp, Op)     f32   logits (lane-dense; written on the last time block)
    h_ref, c_ref: (Bp, Hs) f32  VMEM scratch persisting across time blocks
    """
    Hs = whh_ref.shape[0]
    blk = pl.program_id(0)

    @pl.when(blk == 0)
    def _():
        h_ref[...] = jnp.zeros_like(h_ref)
        c_ref[...] = jnp.zeros_like(c_ref)

    lens = len_ref[...]                     # (Bp, 1) i32, loaded once per block
    t0 = blk * ts                           # global time offset of this block

    def step(t, carry):
        h, c = carry                        # (Bp, Hs) f32, carried in vregs
        # W_hh^T read from VMEM inside the step (not hoisted): 3 vld/cycle hide under
        # MXU latency and vreg pressure stays low even when Hs grows (perf review).
        gates = gx_ref[t].astype(jnp.float32) + jnp.dot(
            h.astype(jnp.bfloat16), whh_ref[...],
            preferred_element_type=jnp.float32)          # (Bp, Gw) f32
        i_g = jax.nn.sigmoid(gates[:, 0 * Hs:1 * Hs])
        f_g = jax.nn.sigmoid(gates[:, 1 * Hs:2 * Hs])
        g_g = jnp.tanh(gates[:, 2 * Hs:3 * Hs])
        o_g = jax.nn.sigmoid(gates[:, 3 * Hs:4 * Hs])
        c_new = f_g * c + i_g * g_g
        h_new = o_g * jnp.tanh(c_new)
        keep = (t0 + t) < lens              # (Bp, 1): packed-sequence state freeze
        return (jnp.where(keep, h_new, h), jnp.where(keep, c_new, c))

    h, c = jax.lax.fori_loop(0, ts, step, (h_ref[...], c_ref[...]), unroll=unroll)
    h_ref[...] = h
    c_ref[...] = c

    @pl.when(blk == pl.num_programs(0) - 1)
    def _():
        out_ref[...] = (jnp.dot(h.astype(jnp.bfloat16), wfc_ref[...],
                                preferred_element_type=jnp.float32) + bfc_ref[...])


def lstm_classifier_forward(tokens, lengths, params, *, ts=None):
    """tokens: (B, S) int32, lengths: (B,) int32 -> logits (B, output_dim) float32."""
    emb_tbl = params["embedding"]          # (V, E)  f32
    w_ih_t = params["w_ih_t"]              # (E, Gw) bf16
    b = params["b"]                        # (1, Gw) f32
    w_hh_t = params["w_hh_t"]              # (Hs, Gw) bf16
    w_fc_t = params["w_fc_t"]              # (Hs, Op) bf16
    b_fc = params["b_fc"]                  # (1, Op) f32
    O = params["output_dim"]

    B, S = tokens.shape
    E = emb_tbl.shape[1]
    Hs, Gw = w_hh_t.shape
    Op = w_fc_t.shape[1]
    Bp = _round_up(B, 8)

    if ts is None:
        ts = min(S, 32)
    Sp = _round_up(S, ts)

    # Glue (plain JAX): time-major embedding gather (no gx transpose pass) + hoisted,
    # serial-independent input projection as ONE MXU-efficient matmul over S*B rows.
    emb = jnp.take(emb_tbl, tokens.T, axis=0)                          # (S, B, E)
    gx = jnp.dot(emb.reshape(S * B, E).astype(jnp.bfloat16), w_ih_t,
                 preferred_element_type=jnp.float32) + b               # f32 accumulate
    gx = gx.astype(jnp.bfloat16).reshape(S, B, Gw)                     # stream in bf16
    gx = jnp.pad(gx, ((0, Sp - S), (0, Bp - B), (0, 0)))               # pad S, batch
    lens = jnp.pad(lengths.astype(jnp.int32), (0, Bp - B)).reshape(Bp, 1)

    n_blk = Sp // ts
    kernel = functools.partial(lstm_classifier_kernel, ts=ts, unroll=min(ts, 8))

    # Scoped-VMEM budget sized to actual residency (+ headroom); default 16/32 MiB
    # scoped limits are not relied upon.
    vmem_bytes = (2 * ts * Bp * Gw * 2          # gx blocks (bf16, double-buffered)
                  + Hs * Gw * 2 + Hs * Op * 2   # whh, wfc (bf16)
                  + Op * 4 + Bp * 4 * 128       # bfc, lens (with SMEM/VMEM padding)
                  + 2 * Bp * Hs * 4             # h/c scratch
                  + 2 * Bp * Op * 4)            # out (double-buffered)
    vmem_bytes = min(max(int(vmem_bytes * 1.5) + (4 << 20), 8 << 20), 100 << 20)

    out = pl.pallas_call(
        kernel,
        out_shape=jax.ShapeDtypeStruct((Bp, Op), jnp.float32),
        grid=(n_blk,),
        in_specs=[
            pl.BlockSpec((ts, Bp, Gw), lambda s: (s, 0, 0)),   # gx: blocked over time
            pl.BlockSpec((Bp, 1), lambda s: (0, 0)),           # lengths: resident
            pl.BlockSpec((Hs, Gw), lambda s: (0, 0)),           # W_hh^T: resident
            pl.BlockSpec((Hs, Op), lambda s: (0, 0)),           # W_fc^T: resident
            pl.BlockSpec((1, Op), lambda s: (0, 0)),            # b_fc: resident
        ],
        out_specs=pl.BlockSpec((Bp, Op), lambda s: (0, 0)),     # logits: resident
        scratch_shapes=[pltpu.VMEM((Bp, Hs), jnp.float32),      # h
                        pltpu.VMEM((Bp, Hs), jnp.float32)],     # c
        compiler_params=pltpu.CompilerParams(
            dimension_semantics=("arbitrary",),                 # serial time axis
            vmem_limit_bytes=vmem_bytes),
    )(gx, lens, w_hh_t, w_fc_t, b_fc)

    return out[:B, :O]


def init_params(key, vocab_size, embed_dim, hidden_dim, output_dim, pad_idx):
    LANE = 128
    H = hidden_dim
    # Layout choice (perf review): for H < 128 pad only the combined 4H gate dim to a
    # lane multiple (per-gate stride Hs == H, 4x less gx traffic); for H >= 128 use
    # lane-aligned per-gate blocks (Hs = roundup(H, 128)).
    Hs = H if H < LANE else _round_up(H, LANE)
    Gw = _round_up(4 * Hs, LANE)            # padded combined-gate width
    Op = _round_up(output_dim, LANE)        # lane-dense output width

    ks = jax.random.split(key, 6)
    scale = 0.1
    embedding = scale * jax.random.normal(ks[0], (vocab_size, embed_dim), jnp.float32)
    embedding = embedding.at[pad_idx].set(0.0)   # nn.Embedding padding_idx row is zero
    w_ih = scale * jax.random.normal(ks[1], (4 * H, embed_dim), jnp.float32)
    w_hh = scale * jax.random.normal(ks[2], (4 * H, H), jnp.float32)
    b_ih = scale * jax.random.normal(ks[3], (4 * H,), jnp.float32)
    b_hh = scale * jax.random.normal(ks[4], (4 * H,), jnp.float32)
    w_fc = scale * jax.random.normal(ks[5], (output_dim, H), jnp.float32)
    b_fc = jnp.zeros((output_dim,), jnp.float32)

    def pad_gates(m):
        # (..., 4H) -> (..., Gw): PyTorch gate g (order i, f, g, o) goes to columns
        # [g*Hs, g*Hs+H); all padding columns are exactly zero.
        out = jnp.zeros(m.shape[:-1] + (Gw,), m.dtype)
        for g in range(4):
            out = out.at[..., g * Hs:g * Hs + H].set(m[..., g * H:(g + 1) * H])
        return out

    w_ih_t = pad_gates(w_ih.T)                                         # (E, Gw)
    w_hh_t = jnp.pad(pad_gates(w_hh.T), ((0, Hs - H), (0, 0)))         # (Hs, Gw)
    b = pad_gates((b_ih + b_hh).reshape(1, 4 * H))                     # (1, Gw)
    w_fc_t = jnp.pad(w_fc.T, ((0, Hs - H), (0, Op - output_dim)))      # (Hs, Op)
    b_fc_p = jnp.pad(b_fc.reshape(1, -1), ((0, 0), (0, Op - output_dim)))

    return {
        "embedding": embedding,
        "w_ih_t": w_ih_t.astype(jnp.bfloat16),   # bf16 MXU operands
        "b": b,                                  # biases / state math stay f32
        "w_hh_t": w_hh_t.astype(jnp.bfloat16),
        "w_fc_t": w_fc_t.astype(jnp.bfloat16),
        "b_fc": b_fc_p,
        "output_dim": output_dim,
        # Raw f32 weights kept only for the reference check in __main__.
        "_raw": {"w_ih": w_ih, "w_hh": w_hh, "b_ih": b_ih, "b_hh": b_hh,
                 "w_fc": w_fc, "b_fc": b_fc},
    }


def _reference_forward(tokens, lengths, params):
    """Pure-JAX f32 reference matching PyTorch LSTMClassifier forward semantics."""
    raw = params["_raw"]
    H = raw["w_hh"].shape[1]
    emb = jnp.take(params["embedding"], tokens, axis=0)        # (B, S, E)
    B, S, _ = emb.shape
    h = jnp.zeros((B, H), jnp.float32)
    c = jnp.zeros((B, H), jnp.float32)
    bias = raw["b_ih"] + raw["b_hh"]
    for t in range(S):
        gates = emb[:, t] @ raw["w_ih"].T + bias + h @ raw["w_hh"].T
        i = jax.nn.sigmoid(gates[:, 0 * H:1 * H])
        f = jax.nn.sigmoid(gates[:, 1 * H:2 * H])
        g = jnp.tanh(gates[:, 2 * H:3 * H])
        o = jax.nn.sigmoid(gates[:, 3 * H:4 * H])
        c_new = f * c + i * g
        h_new = o * jnp.tanh(c_new)
        keep = (t < lengths)[:, None]
        h = jnp.where(keep, h_new, h)
        c = jnp.where(keep, c_new, c)
    return h @ raw["w_fc"].T + raw["b_fc"]


if __name__ == "__main__":
    B, S = 2, 8
    vocab_size, embed_dim, hidden_dim, output_dim = 20, 32, 32, 4
    pad_idx = 0

    key = jax.random.PRNGKey(0)
    k_tok, k_par = jax.random.split(key)

    lengths = jnp.array([8, 5], dtype=jnp.int32)
    tokens = jax.random.randint(k_tok, (B, S), 1, vocab_size, dtype=jnp.int32)
    # Zero out (pad) positions beyond each sequence's length.
    pad_mask = jnp.arange(S, dtype=jnp.int32)[None, :] < lengths[:, None]
    tokens = jnp.where(pad_mask, tokens, pad_idx)

    params = init_params(k_par, vocab_size, embed_dim, hidden_dim, output_dim, pad_idx)

    # ts=4 -> grid of 2 time blocks, exercising the scratch-carry + pl.when paths.
    logits = lstm_classifier_forward(tokens, lengths, params, ts=4)
    jax.block_until_ready(logits)
    assert logits.shape == (B, output_dim)

    # Loose-tolerance check vs f32 reference (bf16 MXU operands compound rounding).
    ref = _reference_forward(tokens, lengths, params)
    assert bool(jnp.allclose(logits, ref, atol=5e-2, rtol=5e-2)), (logits, ref)

    print("KERNEL_OK")
</pallas_src>

<mosaic_0001>
module attributes {stable_mosaic.version = 11 : i64} {
  func.func @lstm_classifier_kernel(%arg0: i32, %arg1: memref<4x8x128xbf16, #tpu.memory_space<vmem>>, %arg2: memref<8x1xi32, #tpu.memory_space<vmem>>, %arg3: memref<32x128xbf16, #tpu.memory_space<vmem>>, %arg4: memref<32x128xbf16, #tpu.memory_space<vmem>>, %arg5: memref<1x128xf32, #tpu.memory_space<vmem>>, %arg6: memref<8x128xf32, #tpu.memory_space<vmem>>, %arg7: memref<8x32xf32, #tpu.memory_space<vmem>>, %arg8: memref<8x32xf32, #tpu.memory_space<vmem>>) attributes {dimension_semantics = [#tpu.dimension_semantics<arbitrary>], iteration_bounds = array<i64: 2>, scalar_prefetch = 0 : i64, scratch_operands = 2 : i64, tpu.core_type = #tpu.core_type<tc>, window_params = [{transform_indices = @transform_0, window_bounds = array<i64: 4, 8, 128>}, {pipeline_mode = #tpu.pipeline_mode<synchronous>, transform_indices = @transform_1, window_bounds = array<i64: 8, 1>}, {pipeline_mode = #tpu.pipeline_mode<synchronous>, transform_indices = @transform_2, window_bounds = array<i64: 32, 128>}, {pipeline_mode = #tpu.pipeline_mode<synchronous>, transform_indices = @transform_3, window_bounds = array<i64: 32, 128>}, {pipeline_mode = #tpu.pipeline_mode<synchronous>, transform_indices = @transform_4, window_bounds = array<i64: 1, 128>}, {pipeline_mode = #tpu.pipeline_mode<synchronous>, transform_indices = @transform_5, window_bounds = array<i64: 8, 128>}]} {
    %c0_i32 = arith.constant 0 : i32
    %0 = arith.cmpi eq, %arg0, %c0_i32 : i32
    %1 = arith.extui %0 : i1 to i32
    %c0_i32_0 = arith.constant 0 : i32
    %2 = arith.cmpi ne, %1, %c0_i32_0 : i32
    scf.if %2 {
      %cst_45 = arith.constant 0.000000e+00 : f32
      %180 = vector.broadcast %cst_45 : f32 to vector<8x32xf32>
      %c0_46 = arith.constant 0 : index
      %c0_47 = arith.constant 0 : index
      %181 = vector.load %arg7[%c0_46, %c0_47] : memref<8x32xf32, #tpu.memory_space<vmem>>, vector<8x32xf32>
      tpu.vector_store %arg7[%c0_46, %c0_47], %180 {strides = array<i32>} : memref<8x32xf32, #tpu.memory_space<vmem>>, vector<8x32xf32>,
      %cst_48 = arith.constant 0.000000e+00 : f32
      %182 = vector.broadcast %cst_48 : f32 to vector<8x32xf32>
      %c0_49 = arith.constant 0 : index
      %c0_50 = arith.constant 0 : index
      %183 = vector.load %arg8[%c0_49, %c0_50] : memref<8x32xf32, #tpu.memory_space<vmem>>, vector<8x32xf32>
      tpu.vector_store %arg8[%c0_49, %c0_50], %182 {strides = array<i32>} : memref<8x32xf32, #tpu.memory_space<vmem>>, vector<8x32xf32>,
    } else {
    }
    %c0 = arith.constant 0 : index
    %c0_1 = arith.constant 0 : index
    %3 = vector.load %arg2[%c0, %c0_1] : memref<8x1xi32, #tpu.memory_space<vmem>>, vector<8x1xi32>
    %c4_i32 = arith.constant 4 : i32
    %4 = arith.muli %arg0, %c4_i32 : i32
    %c0_2 = arith.constant 0 : index
    %c0_3 = arith.constant 0 : index
    %5 = vector.load %arg7[%c0_2, %c0_3] : memref<8x32xf32, #tpu.memory_space<vmem>>, vector<8x32xf32>
    %c0_4 = arith.constant 0 : index
    %c0_5 = arith.constant 0 : index
    %6 = vector.load %arg8[%c0_4, %c0_5] : memref<8x32xf32, #tpu.memory_space<vmem>>, vector<8x32xf32>
    %c0_i32_6 = arith.constant 0 : i32
    %7 = arith.index_cast %c0_i32_6 : i32 to index
    %c0_7 = arith.constant 0 : index
    %c0_8 = arith.constant 0 : index
    %8 = vector.load %arg1[%7, %c0_7, %c0_8] : memref<4x8x128xbf16, #tpu.memory_space<vmem>>, vector<1x8x128xbf16>
    %9 = vector.shape_cast %8 : vector<1x8x128xbf16> to vector<8x128xbf16>
    %10 = arith.extf %9 : vector<8x128xbf16> to vector<8x128xf32>
    %11 = arith.truncf %5 : vector<8x32xf32> to vector<8x32xbf16>
    %c0_9 = arith.constant 0 : index
    %c0_10 = arith.constant 0 : index
    %12 = vector.load %arg3[%c0_9, %c0_10] : memref<32x128xbf16, #tpu.memory_space<vmem>>, vector<32x128xbf16>
    %cst = arith.constant dense<0.000000e+00> : vector<8x128xf32>
    %13 = tpu.matmul %11, %12, %cst {dimension_numbers = #tpu.dot_dimension_numbers<[1], [0], [0], [1], [0, 0, 1, 1], [], []>} : vector<8x32xbf16>, vector<32x128xbf16>, vector<8x128xf32> -> vector<8x128xf32>
    %14 = arith.addf %10, %13 : vector<8x128xf32>
    %15 = vector.extract_strided_slice %14 {offsets = [0, 0], sizes = [8, 32], strides = [1, 1]} : vector<8x128xf32> to vector<8x32xf32>
    %16 = arith.negf %15 : vector<8x32xf32>
    %17 = math.exp %16 : vector<8x32xf32>
    %cst_11 = arith.constant 1.000000e+00 : f32
    %18 = vector.broadcast %cst_11 : f32 to vector<8x32xf32>
    %19 = arith.addf %18, %17 : vector<8x32xf32>
    %20 = arith.divf %18, %19 : vector<8x32xf32>
    %21 = vector.extract_strided_slice %14 {offsets = [0, 32], sizes = [8, 32], strides = [1, 1]} : vector<8x128xf32> to vector<8x32xf32>
    %22 = arith.negf %21 : vector<8x32xf32>
    %23 = math.exp %22 : vector<8x32xf32>
    %cst_12 = arith.constant 1.000000e+00 : f32
    %24 = vector.broadcast %cst_12 : f32 to vector<8x32xf32>
    %25 = arith.addf %24, %23 : vector<8x32xf32>
    %26 = arith.divf %24, %25 : vector<8x32xf32>
    %27 = vector.extract_strided_slice %14 {offsets = [0, 64], sizes = [8, 32], strides = [1, 1]} : vector<8x128xf32> to vector<8x32xf32>
    %28 = math.tanh %27 : vector<8x32xf32>
    %29 = vector.extract_strided_slice %14 {offsets = [0, 96], sizes = [8, 32], strides = [1, 1]} : vector<8x128xf32> to vector<8x32xf32>
    %30 = arith.negf %29 : vector<8x32xf32>
    %31 = math.exp %30 : vector<8x32xf32>
    %cst_13 = arith.constant 1.000000e+00 : f32
    %32 = vector.broadcast %cst_13 : f32 to vector<8x32xf32>
    %33 = arith.addf %32, %31 : vector<8x32xf32>
    %34 = arith.divf %32, %33 : vector<8x32xf32>
    %35 = arith.mulf %26, %6 : vector<8x32xf32>
    %36 = arith.mulf %20, %28 : vector<8x32xf32>
    %37 = arith.addf %35, %36 : vector<8x32xf32>
    %38 = math.tanh %37 : vector<8x32xf32>
    %39 = arith.mulf %34, %38 : vector<8x32xf32>
    %40 = arith.addi %4, %c0_i32_6 : i32
    %41 = vector.broadcast %40 : i32 to vector<8x1xi32>
    %42 = arith.cmpi slt, %41, %3 : vector<8x1xi32>
    %43 = vector.shape_cast %42 : vector<8x1xi1> to vector<8x1xi1>
    %44 = vector.broadcast %43 : vector<8x1xi1> to vector<8x32xi1>
    %45 = arith.select %44, %39, %5 : vector<8x32xi1>, vector<8x32xf32>
    %46 = vector.shape_cast %42 : vector<8x1xi1> to vector<8x1xi1>
    %47 = vector.broadcast %46 : vector<8x1xi1> to vector<8x32xi1>
    %48 = arith.select %47, %37, %6 : vector<8x32xi1>, vector<8x32xf32>
    %c1_i32 = arith.constant 1 : i32
    %49 = arith.index_cast %c1_i32 : i32 to index
    %c0_14 = arith.constant 0 : index
    %c0_15 = arith.constant 0 : index
    %50 = vector.load %arg1[%49, %c0_14, %c0_15] : memref<4x8x128xbf16, #tpu.memory_space<vmem>>, vector<1x8x128xbf16>
    %51 = vector.shape_cast %50 : vector<1x8x128xbf16> to vector<8x128xbf16>
    %52 = arith.extf %51 : vector<8x128xbf16> to vector<8x128xf32>
    %53 = arith.truncf %45 : vector<8x32xf32> to vector<8x32xbf16>
    %c0_16 = arith.constant 0 : index
    %c0_17 = arith.constant 0 : index
    %54 = vector.load %arg3[%c0_16, %c0_17] : memref<32x128xbf16, #tpu.memory_space<vmem>>, vector<32x128xbf16>
    %cst_18 = arith.constant dense<0.000000e+00> : vector<8x128xf32>
    %55 = tpu.matmul %53, %54, %cst_18 {dimension_numbers = #tpu.dot_dimension_numbers<[1], [0], [0], [1], [0, 0, 1, 1], [], []>} : vector<8x32xbf16>, vector<32x128xbf16>, vector<8x128xf32> -> vector<8x128xf32>
    %56 = arith.addf %52, %55 : vector<8x128xf32>
    %57 = vector.extract_strided_slice %56 {offsets = [0, 0], sizes = [8, 32], strides = [1, 1]} : vector<8x128xf32> to vector<8x32xf32>
    %58 = arith.negf %57 : vector<8x32xf32>
    %59 = math.exp %58 : vector<8x32xf32>
    %cst_19 = arith.constant 1.000000e+00 : f32
    %60 = vector.broadcast %cst_19 : f32 to vector<8x32xf32>
    %61 = arith.addf %60, %59 : vector<8x32xf32>
    %62 = arith.divf %60, %61 : vector<8x32xf32>
    %63 = vector.extract_strided_slice %56 {offsets = [0, 32], sizes = [8, 32], strides = [1, 1]} : vector<8x128xf32> to vector<8x32xf32>
    %64 = arith.negf %63 : vector<8x32xf32>
    %65 = math.exp %64 : vector<8x32xf32>
    %cst_20 = arith.constant 1.000000e+00 : f32
    %66 = vector.broadcast %cst_20 : f32 to vector<8x32xf32>
    %67 = arith.addf %66, %65 : vector<8x32xf32>
    %68 = arith.divf %66, %67 : vector<8x32xf32>
    %69 = vector.extract_strided_slice %56 {offsets = [0, 64], sizes = [8, 32], strides = [1, 1]} : vector<8x128xf32> to vector<8x32xf32>
    %70 = math.tanh %69 : vector<8x32xf32>
    %71 = vector.extract_strided_slice %56 {offsets = [0, 96], sizes = [8, 32], strides = [1, 1]} : vector<8x128xf32> to vector<8x32xf32>
    %72 = arith.negf %71 : vector<8x32xf32>
    %73 = math.exp %72 : vector<8x32xf32>
    %cst_21 = arith.constant 1.000000e+00 : f32
    %74 = vector.broadcast %cst_21 : f32 to vector<8x32xf32>
    %75 = arith.addf %74, %73 : vector<8x32xf32>
    %76 = arith.divf %74, %75 : vector<8x32xf32>
    %77 = arith.mulf %68, %48 : vector<8x32xf32>
    %78 = arith.mulf %62, %70 : vector<8x32xf32>
    %79 = arith.addf %77, %78 : vector<8x32xf32>
    %80 = math.tanh %79 : vector<8x32xf32>
    %81 = arith.mulf %76, %80 : vector<8x32xf32>
    %82 = arith.addi %4, %c1_i32 : i32
    %83 = vector.broadcast %82 : i32 to vector<8x1xi32>
    %84 = arith.cmpi slt, %83, %3 : vector<8x1xi32>
    %85 = vector.shape_cast %84 : vector<8x1xi1> to vector<8x1xi1>
    %86 = vector.broadcast %85 : vector<8x1xi1> to vector<8x32xi1>
    %87 = arith.select %86, %81, %45 : vector<8x32xi1>, vector<8x32xf32>
    %88 = vector.shape_cast %84 : vector<8x1xi1> to vector<8x1xi1>
    %89 = vector.broadcast %88 : vector<8x1xi1> to vector<8x32xi1>
    %90 = arith.select %89, %79, %48 : vector<8x32xi1>, vector<8x32xf32>
    %c2_i32 = arith.constant 2 : i32
    %91 = arith.index_cast %c2_i32 : i32 to index
    %c0_22 = arith.constant 0 : index
    %c0_23 = arith.constant 0 : index
    %92 = vector.load %arg1[%91, %c0_22, %c0_23] : memref<4x8x128xbf16, #tpu.memory_space<vmem>>, vector<1x8x128xbf16>
    %93 = vector.shape_cast %92 : vector<1x8x128xbf16> to vector<8x128xbf16>
    %94 = arith.extf %93 : vector<8x128xbf16> to vector<8x128xf32>
    %95 = arith.truncf %87 : vector<8x32xf32> to vector<8x32xbf16>
    %c0_24 = arith.constant 0 : index
    %c0_25 = arith.constant 0 : index
    %96 = vector.load %arg3[%c0_24, %c0_25] : memref<32x128xbf16, #tpu.memory_space<vmem>>, vector<32x128xbf16>
    %cst_26 = arith.constant dense<0.000000e+00> : vector<8x128xf32>
    %97 = tpu.matmul %95, %96, %cst_26 {dimension_numbers = #tpu.dot_dimension_numbers<[1], [0], [0], [1], [0, 0, 1, 1], [], []>} : vector<8x32xbf16>, vector<32x128xbf16>, vector<8x128xf32> -> vector<8x128xf32>
    %98 = arith.addf %94, %97 : vector<8x128xf32>
    %99 = vector.extract_strided_slice %98 {offsets = [0, 0], sizes = [8, 32], strides = [1, 1]} : vector<8x128xf32> to vector<8x32xf32>
    %100 = arith.negf %99 : vector<8x32xf32>
    %101 = math.exp %100 : vector<8x32xf32>
    %cst_27 = arith.constant 1.000000e+00 : f32
    %102 = vector.broadcast %cst_27 : f32 to vector<8x32xf32>
    %103 = arith.addf %102, %101 : vector<8x32xf32>
    %104 = arith.divf %102, %103 : vector<8x32xf32>
    %105 = vector.extract_strided_slice %98 {offsets = [0, 32], sizes = [8, 32], strides = [1, 1]} : vector<8x128xf32> to vector<8x32xf32>
    %106 = arith.negf %105 : vector<8x32xf32>
    %107 = math.exp %106 : vector<8x32xf32>
    %cst_28 = arith.constant 1.000000e+00 : f32
    %108 = vector.broadcast %cst_28 : f32 to vector<8x32xf32>
    %109 = arith.addf %108, %107 : vector<8x32xf32>
    %110 = arith.divf %108, %109 : vector<8x32xf32>
    %111 = vector.extract_strided_slice %98 {offsets = [0, 64], sizes = [8, 32], strides = [1, 1]} : vector<8x128xf32> to vector<8x32xf32>
    %112 = math.tanh %111 : vector<8x32xf32>
    %113 = vector.extract_strided_slice %98 {offsets = [0, 96], sizes = [8, 32], strides = [1, 1]} : vector<8x128xf32> to vector<8x32xf32>
    %114 = arith.negf %113 : vector<8x32xf32>
    %115 = math.exp %114 : vector<8x32xf32>
    %cst_29 = arith.constant 1.000000e+00 : f32
    %116 = vector.broadcast %cst_29 : f32 to vector<8x32xf32>
    %117 = arith.addf %116, %115 : vector<8x32xf32>
    %118 = arith.divf %116, %117 : vector<8x32xf32>
    %119 = arith.mulf %110, %90 : vector<8x32xf32>
    %120 = arith.mulf %104, %112 : vector<8x32xf32>
    %121 = arith.addf %119, %120 : vector<8x32xf32>
    %122 = math.tanh %121 : vector<8x32xf32>
    %123 = arith.mulf %118, %122 : vector<8x32xf32>
    %124 = arith.addi %4, %c2_i32 : i32
    %125 = vector.broadcast %124 : i32 to vector<8x1xi32>
    %126 = arith.cmpi slt, %125, %3 : vector<8x1xi32>
    %127 = vector.shape_cast %126 : vector<8x1xi1> to vector<8x1xi1>
    %128 = vector.broadcast %127 : vector<8x1xi1> to vector<8x32xi1>
    %129 = arith.select %128, %123, %87 : vector<8x32xi1>, vector<8x32xf32>
    %130 = vector.shape_cast %126 : vector<8x1xi1> to vector<8x1xi1>
    %131 = vector.broadcast %130 : vector<8x1xi1> to vector<8x32xi1>
    %132 = arith.select %131, %121, %90 : vector<8x32xi1>, vector<8x32xf32>
    %c3_i32 = arith.constant 3 : i32
    %133 = arith.index_cast %c3_i32 : i32 to index
    %c0_30 = arith.constant 0 : index
    %c0_31 = arith.constant 0 : index
    %134 = vector.load %arg1[%133, %c0_30, %c0_31] : memref<4x8x128xbf16, #tpu.memory_space<vmem>>, vector<1x8x128xbf16>
    %135 = vector.shape_cast %134 : vector<1x8x128xbf16> to vector<8x128xbf16>
    %136 = arith.extf %135 : vector<8x128xbf16> to vector<8x128xf32>
    %137 = arith.truncf %129 : vector<8x32xf32> to vector<8x32xbf16>
    %c0_32 = arith.constant 0 : index
    %c0_33 = arith.constant 0 : index
    %138 = vector.load %arg3[%c0_32, %c0_33] : memref<32x128xbf16, #tpu.memory_space<vmem>>, vector<32x128xbf16>
    %cst_34 = arith.constant dense<0.000000e+00> : vector<8x128xf32>
    %139 = tpu.matmul %137, %138, %cst_34 {dimension_numbers = #tpu.dot_dimension_numbers<[1], [0], [0], [1], [0, 0, 1, 1], [], []>} : vector<8x32xbf16>, vector<32x128xbf16>, vector<8x128xf32> -> vector<8x128xf32>
    %140 = arith.addf %136, %139 : vector<8x128xf32>
    %141 = vector.extract_strided_slice %140 {offsets = [0, 0], sizes = [8, 32], strides = [1, 1]} : vector<8x128xf32> to vector<8x32xf32>
    %142 = arith.negf %141 : vector<8x32xf32>
    %143 = math.exp %142 : vector<8x32xf32>
    %cst_35 = arith.constant 1.000000e+00 : f32
    %144 = vector.broadcast %cst_35 : f32 to vector<8x32xf32>
    %145 = arith.addf %144, %143 : vector<8x32xf32>
    %146 = arith.divf %144, %145 : vector<8x32xf32>
    %147 = vector.extract_strided_slice %140 {offsets = [0, 32], sizes = [8, 32], strides = [1, 1]} : vector<8x128xf32> to vector<8x32xf32>
    %148 = arith.negf %147 : vector<8x32xf32>
    %149 = math.exp %148 : vector<8x32xf32>
    %cst_36 = arith.constant 1.000000e+00 : f32
    %150 = vector.broadcast %cst_36 : f32 to vector<8x32xf32>
    %151 = arith.addf %150, %149 : vector<8x32xf32>
    %152 = arith.divf %150, %151 : vector<8x32xf32>
    %153 = vector.extract_strided_slice %140 {offsets = [0, 64], sizes = [8, 32], strides = [1, 1]} : vector<8x128xf32> to vector<8x32xf32>
    %154 = math.tanh %153 : vector<8x32xf32>
    %155 = vector.extract_strided_slice %140 {offsets = [0, 96], sizes = [8, 32], strides = [1, 1]} : vector<8x128xf32> to vector<8x32xf32>
    %156 = arith.negf %155 : vector<8x32xf32>
    %157 = math.exp %156 : vector<8x32xf32>
    %cst_37 = arith.constant 1.000000e+00 : f32
    %158 = vector.broadcast %cst_37 : f32 to vector<8x32xf32>
    %159 = arith.addf %158, %157 : vector<8x32xf32>
    %160 = arith.divf %158, %159 : vector<8x32xf32>
    %161 = arith.mulf %152, %132 : vector<8x32xf32>
    %162 = arith.mulf %146, %154 : vector<8x32xf32>
    %163 = arith.addf %161, %162 : vector<8x32xf32>
    %164 = math.tanh %163 : vector<8x32xf32>
    %165 = arith.mulf %160, %164 : vector<8x32xf32>
    %166 = arith.addi %4, %c3_i32 : i32
    %167 = vector.broadcast %166 : i32 to vector<8x1xi32>
    %168 = arith.cmpi slt, %167, %3 : vector<8x1xi32>
    %169 = vector.shape_cast %168 : vector<8x1xi1> to vector<8x1xi1>
    %170 = vector.broadcast %169 : vector<8x1xi1> to vector<8x32xi1>
    %171 = arith.select %170, %165, %129 : vector<8x32xi1>, vector<8x32xf32>
    %172 = vector.shape_cast %168 : vector<8x1xi1> to vector<8x1xi1>
    %173 = vector.broadcast %172 : vector<8x1xi1> to vector<8x32xi1>
    %174 = arith.select %173, %163, %132 : vector<8x32xi1>, vector<8x32xf32>
    %c4_i32_38 = arith.constant 4 : i32
    %c0_39 = arith.constant 0 : index
    %c0_40 = arith.constant 0 : index
    %175 = vector.load %arg7[%c0_39, %c0_40] : memref<8x32xf32, #tpu.memory_space<vmem>>, vector<8x32xf32>
    tpu.vector_store %arg7[%c0_39, %c0_40], %171 {strides = array<i32>} : memref<8x32xf32, #tpu.memory_space<vmem>>, vector<8x32xf32>,
    %c0_41 = arith.constant 0 : index
    %c0_42 = arith.constant 0 : index
    %176 = vector.load %arg8[%c0_41, %c0_42] : memref<8x32xf32, #tpu.memory_space<vmem>>, vector<8x32xf32>
    tpu.vector_store %arg8[%c0_41, %c0_42], %174 {strides = array<i32>} : memref<8x32xf32, #tpu.memory_space<vmem>>, vector<8x32xf32>,
    %c1_i32_43 = arith.constant 1 : i32
    %177 = arith.cmpi eq, %arg0, %c1_i32_43 : i32
    %178 = arith.extui %177 : i1 to i32
    %c0_i32_44 = arith.constant 0 : i32
    %179 = arith.cmpi ne, %178, %c0_i32_44 : i32
    scf.if %179 {
      %180 = arith.truncf %171 : vector<8x32xf32> to vector<8x32xbf16>
      %c0_45 = arith.constant 0 : index
      %c0_46 = arith.constant 0 : index
      %181 = vector.load %arg4[%c0_45, %c0_46] : memref<32x128xbf16, #tpu.memory_space<vmem>>, vector<32x128xbf16>
      %cst_47 = arith.constant dense<0.000000e+00> : vector<8x128xf32>
      %182 = tpu.matmul %180, %181, %cst_47 {dimension_numbers = #tpu.dot_dimension_numbers<[1], [0], [0], [1], [0, 0, 1, 1], [], []>} : vector<8x32xbf16>, vector<32x128xbf16>, vector<8x128xf32> -> vector<8x128xf32>
      %c0_48 = arith.constant 0 : index
      %c0_49 = arith.constant 0 : index
      %183 = vector.load %arg5[%c0_48, %c0_49] : memref<1x128xf32, #tpu.memory_space<vmem>>, vector<1x128xf32>
      %184 = vector.broadcast %183 : vector<1x128xf32> to vector<8x128xf32>
      %185 = arith.addf %182, %184 : vector<8x128xf32>
      %c0_50 = arith.constant 0 : index
      %c0_51 = arith.constant 0 : index
      %186 = vector.load %arg6[%c0_50, %c0_51] : memref<8x128xf32, #tpu.memory_space<vmem>>, vector<8x128xf32>
      tpu.vector_store %arg6[%c0_50, %c0_51], %185 {strides = array<i32>} : memref<8x128xf32, #tpu.memory_space<vmem>>, vector<8x128xf32>,
    } else {
    }
    return
  }
  func.func @transform_0(%arg0: i32) -> (i32, i32, i32) {
    %c0_i32 = arith.constant 0 : i32
    %c0_i32_0 = arith.constant 0 : i32
    %c0_i32_1 = arith.constant 0 : i32
    return %arg0, %c0_i32, %c0_i32_0 : i32, i32, i32
  }
  func.func @transform_1(%arg0: i32) -> (i32, i32) {
    %c0_i32 = arith.constant 0 : i32
    %c0_i32_0 = arith.constant 0 : i32
    %c0_i32_1 = arith.constant 0 : i32
    return %c0_i32, %c0_i32_0 : i32, i32
  }
  func.func @transform_2(%arg0: i32) -> (i32, i32) {
    %c0_i32 = arith.constant 0 : i32
    %c0_i32_0 = arith.constant 0 : i32
    %c0_i32_1 = arith.constant 0 : i32
    return %c0_i32, %c0_i32_0 : i32, i32
  }
  func.func @transform_3(%arg0: i32) -> (i32, i32) {
    %c0_i32 = arith.constant 0 : i32
    %c0_i32_0 = arith.constant 0 : i32
    %c0_i32_1 = arith.constant 0 : i32
    return %c0_i32, %c0_i32_0 : i32, i32
  }
  func.func @transform_4(%arg0: i32) -> (i32, i32) {
    %c0_i32 = arith.constant 0 : i32
    %c0_i32_0 = arith.constant 0 : i32
    %c0_i32_1 = arith.constant 0 : i32
    return %c0_i32, %c0_i32_0 : i32, i32
  }
  func.func @transform_5(%arg0: i32) -> (i32, i32) {
    %c0_i32 = arith.constant 0 : i32
    %c0_i32_0 = arith.constant 0 : i32
    %c0_i32_1 = arith.constant 0 : i32
    return %c0_i32, %c0_i32_0 : i32, i32
  }
}

</mosaic_0001>

<llo_original>
// kernel: tpu_custom_call.1
$region0: #{tpu_custom_call.1}
  #allocation0 [shape = 'u32[]', space=smem, size = 0x4, offset = 0x4, fixed_abs, tag = 'smem constant byte address 0x4 - core index']
  #allocation1 [shape = 'u32[144,128]{1,0:T(1,128)}', space=vmem, size = 0x12000, scoped, tag = 'internal scratch']
  #allocation2 [shape = 'f32[8,32]{1,0:T(8,128)}', space=vmem, size = 0x1000, scoped, tag = 'scratch operand']
  #allocation3 [shape = 'f32[8,32]{1,0:T(8,128)}', space=vmem, size = 0x1000, scoped, tag = 'scratch operand']
  %s0 = inlined_call_operand.hbm [shape: bf16[8,8,128], index: 0, kind: input, shape index: {}]
  %s1 = inlined_call_operand.vmem [shape: s32[8,1], index: 1, kind: input, shape index: {}]
  %s2 = inlined_call_operand.vmem [shape: bf16[32,128], index: 2, kind: input, shape index: {}]
  %s3 = inlined_call_operand.hbm [shape: bf16[32,128], index: 3, kind: input, shape index: {}]
  %s4 = inlined_call_operand.vmem [shape: f32[1,128], index: 4, kind: input, shape index: {}]
  %s5 = inlined_call_operand.hbm [shape: f32[8,128], index: 5, kind: output, shape index: {}]
  %s6 = sld [smem:[#allocation0]]
  $region69: #{tpu_custom_call.1} parent=0
    _
  %s8 = ssub.s32 1, %s6
  %s9 = scalar_select 0, %s8, %s6
  $region1: #{tpu_custom_call.1} parent=0
    #allocation4 [shape = 'u8[16384]{0}', space=vmem, size = 0x4000, scoped, tag = 'input window, operand 0']
    #allocation5 [shape = 's32[2]{0}', space=sflag, size = 0x8, scoped, tag = 'scoped memory for tpu_custom_call.1']
    #allocation6 [shape = 's32[2]{0}', space=sflag, size = 0x8, scoped, tag = 'scoped memory for tpu_custom_call.1']
    #allocation7 [shape = 'u8[8192]{0}', space=vmem, size = 0x2000, scoped, tag = 'input window, operand 3, single buffered']
    #allocation8 [shape = 's32[1]{0}', space=sflag, size = 0x4, scoped, tag = 'scoped memory for tpu_custom_call.1']
    #allocation9 [shape = 'u8[4096]{0}', space=vmem, size = 0x1000, scoped, tag = 'output window, operand 0, single buffered']
    %10 = vsyncpa [#allocation5], 0
    %s11 = scalar_lea.sflag [#allocation5], 1
    %12 = vsyncpa %s11, 0
    %13 = vsyncpa [#allocation8], 0
    %14 = vsyncpa [#allocation6], 0
    loop: start=0, step=1, limit=4
    $region2: #{tpu_custom_call.1} parent=1 // loop_pre_header
      _
    $region3: #{tpu_custom_call.1} parent=1 // loop_header
      %s16 = sphi 0, %s20
      %p17 = scmp.ge.s32.totalorder %s16, 4
      %s26 = sphi 0, %s28
      %s29 = sphi 0, %s26
      %s30 = sphi 0, %s29
      %s46 = sphi 0, %s30
      %s50 = sphi 0, %s50
      %s52 = sphi 0, %s50
      %s53 = sphi 0, %s52
      %s67 = sphi 0, %s53
      %s71 = sphi 0, %s71
      %s73 = sphi 0, %s71
      %s74 = sphi 0, %s73
      %s88 = sphi 0, %s74
      %s92 = sphi 0, %s92
      %s94 = sphi 0, %s92
      %s95 = sphi 0, %s94
      %s109 = sphi 0, %s95
      %s113 = sphi 0, %s113
      %s115 = sphi 0, %s113
      %s116 = sphi 0, %s115
      %s130 = sphi 0, %s116
      %s134 = sphi 0, %s134
      %s136 = sphi 0, %s134
      %s137 = sphi 0, %s136
      %s151 = sphi 0, %s137
    $region4: #{tpu_custom_call.1} parent=1 // loop_header_branch
      %19 = sbr.rel (%p17) target = $region8
    $region5: #{tpu_custom_call.1} parent=1 // loop_body
      %s21 = ssub.s32 %s16, 1
      %s22 = ssub.s32 %s16, 2
      %s23 = sadd.s32 %s16, 1
      %s24 = ssub.s32 %s16, %s23
      %p25 = scmp.eq.s32.totalorder %s24, 0
      %s27 = sadd.s32 %s26, 1
      %s28 = scalar_select %p25, %s26, %s27
      %p31 = pneg %p25
      %p32 = scmp.eq.s32.totalorder %s16, 1
      %p33 = por %p31, %p32
      %p34 = scmp.ne.s32.totalorder %s26, %s29
      %p35 = scmp.eq.s32.totalorder %s16, 0
      %p36 = por %p34, %p35
      %p37 = scmp.ne.s32.totalorder %s26, %s29
      %p38 = scmp.eq.s32.totalorder %s21, 1
      %p39 = por %p37, %p38
      %p40 = scmp.ne.s32.totalorder %s29, %s30
      %p41 = scmp.eq.s32.totalorder %s21, 0
      %p42 = por %p40, %p41
      %p43 = scmp.ne.s32.totalorder %s29, %s30
      %p44 = scmp.eq.s32.totalorder %s22, 1
      %p45 = por %p43, %p44
      %p47 = scmp.ne.s32.totalorder %s30, %s46
      %p48 = scmp.eq.s32.totalorder %s22, 0
      %p49 = por %p47, %p48
      %s51 = sadd.s32 %s50, 1
      %p54 = scmp.eq.s32.totalorder %s16, 1
      %p55 = scmp.ne.s32.totalorder %s50, %s52
      %p56 = scmp.eq.s32.totalorder %s16, 0
      %p57 = por %p55, %p56
      %p58 = scmp.ne.s32.totalorder %s50, %s52
      %p59 = scmp.eq.s32.totalorder %s21, 1
      %p60 = por %p58, %p59
      %p61 = scmp.ne.s32.totalorder %s52, %s53
      %p62 = scmp.eq.s32.totalorder %s21, 0
      %p63 = por %p61, %p62
      %p64 = scmp.ne.s32.totalorder %s52, %s53
      %p65 = scmp.eq.s32.totalorder %s22, 1
      %p66 = por %p64, %p65
      %p68 = scmp.ne.s32.totalorder %s53, %s67
      %p69 = scmp.eq.s32.totalorder %s22, 0
      %p70 = por %p68, %p69
      %s72 = sadd.s32 %s71, 1
      %p75 = scmp.eq.s32.totalorder %s16, 1
      %p76 = scmp.ne.s32.totalorder %s71, %s73
      %p77 = scmp.eq.s32.totalorder %s16, 0
      %p78 = por %p76, %p77
      %p79 = scmp.ne.s32.totalorder %s71, %s73
      %p80 = scmp.eq.s32.totalorder %s21, 1
      %p81 = por %p79, %p80
      %p82 = scmp.ne.s32.totalorder %s73, %s74
      %p83 = scmp.eq.s32.totalorder %s21, 0
      %p84 = por %p82, %p83
      %p85 = scmp.ne.s32.totalorder %s73, %s74
      %p86 = scmp.eq.s32.totalorder %s22, 1
      %p87 = por %p85, %p86
      %p89 = scmp.ne.s32.totalorder %s74, %s88
      %p90 = scmp.eq.s32.totalorder %s22, 0
      %p91 = por %p89, %p90
      %s93 = sadd.s32 %s92, 1
      %p96 = scmp.eq.s32.totalorder %s16, 1
      %p97 = scmp.ne.s32.totalorder %s92, %s94
      %p98 = scmp.eq.s32.totalorder %s16, 0
      %p99 = por %p97, %p98
      %p100 = scmp.ne.s32.totalorder %s92, %s94
      %p101 = scmp.eq.s32.totalorder %s21, 1
      %p102 = por %p100, %p101
      %p103 = scmp.ne.s32.totalorder %s94, %s95
      %p104 = scmp.eq.s32.totalorder %s21, 0
      %p105 = por %p103, %p104
      %p106 = scmp.ne.s32.totalorder %s94, %s95
      %p107 = scmp.eq.s32.totalorder %s22, 1
      %p108 = por %p106, %p107
      %p110 = scmp.ne.s32.totalorder %s95, %s109
      %p111 = scmp.eq.s32.totalorder %s22, 0
      %p112 = por %p110, %p111
      %s114 = sadd.s32 %s113, 1
      %p117 = scmp.eq.s32.totalorder %s16, 1
      %p118 = scmp.ne.s32.totalorder %s113, %s115
      %p119 = scmp.eq.s32.totalorder %s16, 0
      %p120 = por %p118, %p119
      %p121 = scmp.ne.s32.totalorder %s113, %s115
      %p122 = scmp.eq.s32.totalorder %s21, 1
      %p123 = por %p121, %p122
      %p124 = scmp.ne.s32.totalorder %s115, %s116
      %p125 = scmp.eq.s32.totalorder %s21, 0
      %p126 = por %p124, %p125
      %p127 = scmp.ne.s32.totalorder %s115, %s116
      %p128 = scmp.eq.s32.totalorder %s22, 1
      %p129 = por %p127, %p128
      %p131 = scmp.ne.s32.totalorder %s116, %s130
      %p132 = scmp.eq.s32.totalorder %s22, 0
      %p133 = por %p131, %p132
      %s135 = sadd.s32 %s134, 1
      %p138 = scmp.eq.s32.totalorder %s16, 1
      %p139 = scmp.ne.s32.totalorder %s134, %s136
      %p140 = scmp.eq.s32.totalorder %s16, 0
      %p141 = por %p139, %p140
      %p142 = scmp.ne.s32.totalorder %s134, %s136
      %p143 = scmp.eq.s32.totalorder %s21, 1
      %p144 = por %p142, %p143
      %p145 = scmp.ne.s32.totalorder %s136, %s137
      %p146 = scmp.eq.s32.totalorder %s21, 0
      %p147 = por %p145, %p146
      %p148 = scmp.ne.s32.totalorder %s136, %s137
      %p149 = scmp.eq.s32.totalorder %s22, 1
      %p150 = por %p148, %p149
      %p152 = scmp.ne.s32.totalorder %s137, %s151
      %p153 = scmp.eq.s32.totalorder %s22, 0
      %p154 = por %p152, %p153
      %p155 = scmp.le.s32.totalorder 1, %s16
      %p156 = scmp.lt.s32.totalorder %s16, 3
      %p157 = pnand %p155, %p156
      %p158 = pneg %p157
      // Predicated region
      $region9: #{tpu_custom_call.1} parent=5 // pred_check
        _
      $region10: #{tpu_custom_call.1} parent=5 // pred_check_branch
        %160 = sbr.rel (%p157) target = $region12
      $region11: #{tpu_custom_call.1} parent=5 // pred_region
        %s161 = ssub.s32 %s16, 1
        // Predicated region
        $region13: #{tpu_custom_call.1} parent=11 // pred_check
          %p162 = pneg %p63
        $region14: #{tpu_custom_call.1} parent=11 // pred_check_branch
          %164 = sbr.rel (%p162) target = $region16
        $region15: #{tpu_custom_call.1} parent=11 // pred_region
          _
        $region16: #{tpu_custom_call.1} parent=11 // pred_fallthru
          _
        // Predicated region
        $region17: #{tpu_custom_call.1} parent=11 // pred_check
          %p165 = pneg %p84
        $region18: #{tpu_custom_call.1} parent=11 // pred_check_branch
          %167 = sbr.rel (%p165) target = $region20
        $region19: #{tpu_custom_call.1} parent=11 // pred_region
          _
        $region20: #{tpu_custom_call.1} parent=11 // pred_fallthru
          _
        // Predicated region
        $region21: #{tpu_custom_call.1} parent=11 // pred_check
          %p168 = pneg %p105
        $region22: #{tpu_custom_call.1} parent=11 // pred_check_branch
          %170 = sbr.rel (%p168) target = $region24
        $region23: #{tpu_custom_call.1} parent=11 // pred_region
          %s172 = ssub.s32 256, 256
          %173 = vsyncadd [#allocation8], %s172
          %s174 = sshll.u32 [#allocation7], 4
          %s175 = int_to_ptr.vmem [resolvable:$true] %s174
          %180 = dma.hbm_to_vmem [thread:$0]  %s3, 256, %s175, [#allocation8], 64, 64, 4
        $region24: #{tpu_custom_call.1} parent=11 // pred_fallthru
          _
        // Predicated region
        $region25: #{tpu_custom_call.1} parent=11 // pred_check
          %p181 = pneg %p126
        $region26: #{tpu_custom_call.1} parent=11 // pred_check_branch
          %183 = sbr.rel (%p181) target = $region28
        $region27: #{tpu_custom_call.1} parent=11 // pred_region
          _
        $region28: #{tpu_custom_call.1} parent=11 // pred_fallthru
          _
      $region12: #{tpu_custom_call.1} parent=5 // pred_fallthru
        _
      %p184 = scmp.lt.s32.totalorder %s16, 2
      // Predicated region
      $region29: #{tpu_custom_call.1} parent=5 // pred_check
        %p185 = pneg %p184
      $region30: #{tpu_custom_call.1} parent=5 // pred_check_branch
        %187 = sbr.rel (%p185) target = $region32
      $region31: #{tpu_custom_call.1} parent=5 // pred_region
        // Predicated region
        $region33: #{tpu_custom_call.1} parent=31 // pred_check
          %p188 = pneg %p36
        $region34: #{tpu_custom_call.1} parent=31 // pred_check_branch
          %190 = sbr.rel (%p188) target = $region36
        $region35: #{tpu_custom_call.1} parent=31 // pred_region
          %s191 = sand.u32 %s26, 1
          %s192 = scalar_lea.sflag [#allocation5], %s191
          %s193 = sand.u32 %s26, 1
          %s194 = smul.addr %s193, 16
          %s195 = scalar_lea.vmem [#allocation4], %s194
          %s196 = smul.u32 4, %s16
          %s198 = ssub.s32 256, 256
          %199 = vsyncadd %s192, %s198
          %s200 = smul.addr %s196, 64
          %s201 = scalar_lea.hbm %s0, %s200
          %s202 = sshll.u32 %s195, 4
          %s203 = int_to_ptr.vmem [resolvable:$true] %s202
          %208 = dma.hbm_to_vmem [thread:$0]  %s201, 256, %s203, %s192, 64, 64, 4
        $region36: #{tpu_custom_call.1} parent=31 // pred_fallthru
          _
      $region32: #{tpu_custom_call.1} parent=5 // pred_fallthru
        _
      %p209 = scmp.le.s32.totalorder 1, %s16
      %p210 = scmp.lt.s32.totalorder %s16, 3
      %p211 = pnand %p209, %p210
      %p212 = pneg %p211
      // Predicated region
      $region37: #{tpu_custom_call.1} parent=5 // pred_check
        _
      $region38: #{tpu_custom_call.1} parent=5 // pred_check_branch
        %214 = sbr.rel (%p211) target = $region40
      $region39: #{tpu_custom_call.1} parent=5 // pred_region
        %s215 = ssub.s32 %s16, 1
        %s216 = sand.u32 %s29, 1
        %s217 = scalar_lea.sflag [#allocation5], %s216
        %s218 = sand.u32 %s29, 1
        %s219 = smul.addr %s218, 16
        %s220 = scalar_lea.vmem [#allocation4], %s219
        // Predicated region
        $region41: #{tpu_custom_call.1} parent=39 // pred_check
          %p221 = pneg %p42
        $region42: #{tpu_custom_call.1} parent=39 // pred_check_branch
          %223 = sbr.rel (%p221) target = $region44
        $region43: #{tpu_custom_call.1} parent=39 // pred_region
          %224 = dma.done %s217, 256
        $region44: #{tpu_custom_call.1} parent=39 // pred_fallthru
          _
        // Predicated region
        $region45: #{tpu_custom_call.1} parent=39 // pred_check
          %p225 = pneg %p105
        $region46: #{tpu_custom_call.1} parent=39 // pred_check_branch
          %227 = sbr.rel (%p225) target = $region48
        $region47: #{tpu_custom_call.1} parent=39 // pred_region
          %228 = dma.done [#allocation8], 256
        $region48: #{tpu_custom_call.1} parent=39 // pred_fallthru
          _
        %s229 = sand.u32 %s29, 1
        %s230 = scalar_lea.sflag [#allocation5], %s229
        %s231 = sand.u32 %s29, 1
        %s232 = smul.addr %s231, 16
        %s233 = scalar_lea.vmem [#allocation4], %s232
        %p234 = pneg %p42
        %p235 = pneg %p39
        %p236 = pneg %p63
        %p237 = pneg %p60
        %p238 = pneg %p84
        %p239 = pneg %p81
        %p240 = pneg %p105
        %p241 = pneg %p102
        %p242 = pneg %p126
        %p243 = pneg %p123
        %p244 = pneg %p147
        %p245 = pneg %p144
        %s246 = smul.u32 4, %s21
        %p248 = scmp.eq.s32.totalorder %s21, 0
        // Predicated region
        $region49: #{tpu_custom_call.1} parent=39 // pred_check
          %p249 = pneg %p248
        $region50: #{tpu_custom_call.1} parent=39 // pred_check_branch
          %251 = sbr.rel (%p249) target = $region52
        $region51: #{tpu_custom_call.1} parent=39 // pred_region
          %vm252 = vcmask 261120
          %253 = vst.msk [vmem:[#allocation2] sm:$0xff] %vm252, 0.0
          %254 = vst.msk [vmem:[#allocation3] sm:$0xff] %vm252, 0.0
        $region52: #{tpu_custom_call.1} parent=39 // pred_fallthru
          _
        %v255 = vld [vmem:[%s1] sm:$0xff]
        %s256 = smul.u32 %s21, 4
        %v257 = vld [vmem:[#allocation2] sm:$0xff]
        %v258 = vld [vmem:[#allocation3] sm:$0xff]
        %v259 = vld [vmem:[%s220] sm:$0xf]
        %v260 = vunpack.c.l.bf16 %v259
        %v261 = vpack.c.bf16 %v257, %v257
        %v262 = vld [vmem:[%s2] sm:$0xf]
        %v263 = vld [vmem:[%s2 + $0x4] sm:$0xf]
        %v264 = vld [vmem:[%s2 + $0x8] sm:$0xf]
        %v265 = vld [vmem:[%s2 + $0xc] sm:$0xf]
        %v270 = vunpack.c.l.b16 %v262
        %v271 = vunpack.c.l.b16 %v263
        %v272 = vunpack.c.l.b16 %v264
        %v273 = vunpack.c.l.b16 %v265
        %v274 = vpack.c.b16 %v271, %v270
        %v275 = vpack.c.b16 %v273, %v272
        %vm278 = vcmask 261120
        %v280 = vsel %vm278, %v261, 0
        %282 = vmatprep.subr.bf16.mxu0 0
        %283 = vmatpush1.bf16.msra.mxu0 %v274
        %284 = vmatprep.subr.bf16.mxu0 0
        %285 = vmatpush1.bf16.msra.mxu0 %v275
        %286 = vmatprep.subr.bf16.mxu0 0
        %287 = vmatpush1.bf16.msra.mxu0 0
        %288 = vmatprep.subr.bf16.mxu0 0
        %289 = vmatpush1.bf16.msra.mxu0 0
        %290 = vmatprep.subr.bf16.mxu0 0
        %291 = vmatpush1.bf16.msra.mxu0 0
        %292 = vmatprep.subr.bf16.mxu0 0
        %293 = vmatpush1.bf16.msra.mxu0 0
        %294 = vmatprep.subr.bf16.mxu0 0
        %295 = vmatpush1.bf16.msra.mxu0 0
        %296 = vmatprep.subr.bf16.mxu0 0
        %297 = vmatpush1.bf16.msra.mxu0 0
        %298 = vmatprep.subr.bf16.mxu0 0
        %299 = vmatpush1.bf16.msra.mxu0 0
        %300 = vmatprep.subr.bf16.mxu0 0
        %301 = vmatpush1.bf16.msra.mxu0 0
        %302 = vmatprep.subr.bf16.mxu0 0
        %303 = vmatpush1.bf16.msra.mxu0 0
        %304 = vmatprep.subr.bf16.mxu0 0
        %305 = vmatpush1.bf16.msra.mxu0 0
        %306 = vmatprep.subr.bf16.mxu0 0
        %307 = vmatpush1.bf16.msra.mxu0 0
        %308 = vmatprep.subr.bf16.mxu0 0
        %309 = vmatpush1.bf16.msra.mxu0 0
        %310 = vmatprep.subr.bf16.mxu0 0
        %311 = vmatpush1.bf16.msra.mxu0 0
        %312 = vmatprep.subr.bf16.mxu0 0
        %313 = vmatpush1.bf16.msra.mxu0 0
        %314 = vmatprep.mubr.bf16.mxu0 0
        %315 = vmatmul.mubr.bf16.gmra.mrb[0].mxu0 %v280
        %v316 = vpop.f32.mrb[0].mxu0
        %v317 = vadd.f32 0.0, %v316
        %v318 = vpop.f32.mrb[0].mxu0
        %v319 = vpop.f32.mrb[0].mxu0
        %v320 = vpop.f32.mrb[0].mxu0
        %321 = vdwg.mxu0
        %v322 = vadd.f32 %v260, %v317
        %v323 = vxor.u32 %v322, 2147483648
        %v324 = vmul.f32 %v323, 1.442695
        %v325 = vpow.pop %v324
        %v326 = vadd.f32 %v325, 1.0
        %v327 = vrcp.pop %v326
        %v328 = vmul.f32 1.0, %v327
        %v329 = vtanh.pop %v322
        %331 = vrot.lane.b32.xlu0 %v258, 32
        %v332 = vpop.permute.xlu0 %331
        %v334 = vmul.f32 %v328, %v332
        %336 = vrot.lane.b32.xlu0 %v329, 64
        %v337 = vpop.permute.xlu0 %336
        %v339 = vmul.f32 %v328, %v337
        %341 = vrot.lane.b32.xlu0 %v339, 32
        %v342 = vpop.permute.xlu0 %341
        %v344 = vadd.f32 %v334, %v342
        %v345 = vtanh.pop %v344
        %347 = vrot.lane.b32.xlu0 %v345, 64
        %v348 = vpop.permute.xlu0 %347
        %v350 = vmul.f32 %v328, %v348
        %v351 = vstv %s256
        %vm352 = vcmp.lt.s32.totalorder %v351, %v255
        %v353 = vsel %vm352, 1, 0
        %354 = vset.pattern.permute.xlu0 0
        %355 = vperm.xlu0 %354, %v353
        %v356 = vpop.permute.xlu0 %355
        %vm357 = vcmp.eq.s32.totalorder %v356, 1
        %359 = vrot.lane.b32.xlu0 %v257, 96
        %v360 = vpop.permute.xlu0 %359
        %v362 = vsel %vm357, %v350, %v360
        %v363 = vsel %vm357, %v344, %v332
        %s364 = scalar_lea.vmem %s220, 4 [#allocation4]
        %v365 = vld [vmem:[%s364] sm:$0xf]
        %v366 = vunpack.c.l.bf16 %v365
        %v367 = vpack.c.bf16 %v362, %v362
        %369 = vrot.lane.b32.xlu0 %v367, 32
        %v370 = vpop.permute.xlu0 %369
        %v372 = vsel %vm278, %v370, 0
        %374 = vmatprep.subr.bf16.mxu0 0
        %375 = vmatpush1.bf16.msra.mxu0 %v274
        %376 = vmatprep.subr.bf16.mxu0 0
        %377 = vmatpush1.bf16.msra.mxu0 %v275
        %378 = vmatprep.subr.bf16.mxu0 0
        %379 = vmatpush1.bf16.msra.mxu0 0
        %380 = vmatprep.subr.bf16.mxu0 0
        %381 = vmatpush1.bf16.msra.mxu0 0
        %382 = vmatprep.subr.bf16.mxu0 0
        %383 = vmatpush1.bf16.msra.mxu0 0
        %384 = vmatprep.subr.bf16.mxu0 0
        %385 = vmatpush1.bf16.msra.mxu0 0
        %386 = vmatprep.subr.bf16.mxu0 0
        %387 = vmatpush1.bf16.msra.mxu0 0
        %388 = vmatprep.subr.bf16.mxu0 0
        %389 = vmatpush1.bf16.msra.mxu0 0
        %390 = vmatprep.subr.bf16.mxu0 0
        %391 = vmatpush1.bf16.msra.mxu0 0
        %392 = vmatprep.subr.bf16.mxu0 0
        %393 = vmatpush1.bf16.msra.mxu0 0
        %394 = vmatprep.subr.bf16.mxu0 0
        %395 = vmatpush1.bf16.msra.mxu0 0
        %396 = vmatprep.subr.bf16.mxu0 0
        %397 = vmatpush1.bf16.msra.mxu0 0
        %398 = vmatprep.subr.bf16.mxu0 0
        %399 = vmatpush1.bf16.msra.mxu0 0
        %400 = vmatprep.subr.bf16.mxu0 0
        %401 = vmatpush1.bf16.msra.mxu0 0
        %402 = vmatprep.subr.bf16.mxu0 0
        %403 = vmatpush1.bf16.msra.mxu0 0
        %404 = vmatprep.subr.bf16.mxu0 0
        %405 = vmatpush1.bf16.msra.mxu0 0
        %406 = vmatprep.mubr.bf16.mxu0 0
        %407 = vmatmul.mubr.bf16.gmra.mrb[0].mxu0 %v372
        %v408 = vpop.f32.mrb[0].mxu0
        %v409 = vadd.f32 0.0, %v408
        %v410 = vpop.f32.mrb[0].mxu0
        %v411 = vpop.f32.mrb[0].mxu0
        %v412 = vpop.f32.mrb[0].mxu0
        %413 = vdwg.mxu0
        %v414 = vadd.f32 %v366, %v409
        %v415 = vxor.u32 %v414, 2147483648
        %v416 = vmul.f32 %v415, 1.442695
        %v417 = vpow.pop %v416
        %v418 = vadd.f32 %v417, 1.0
        %v419 = vrcp.pop %v418
        %v420 = vmul.f32 1.0, %v419
        %v421 = vtanh.pop %v414
        %v422 = vmul.f32 %v420, %v363
        %424 = vrot.lane.b32.xlu0 %v421, 64
        %v425 = vpop.permute.xlu0 %424
        %v427 = vmul.f32 %v420, %v425
        %429 = vrot.lane.b32.xlu0 %v427, 32
        %v430 = vpop.permute.xlu0 %429
        %v432 = vadd.f32 %v422, %v430
        %v433 = vtanh.pop %v432
        %435 = vrot.lane.b32.xlu0 %v433, 64
        %v436 = vpop.permute.xlu0 %435
        %v438 = vmul.f32 %v420, %v436
        %s439 = sadd.s32 %s256, 1
        %v440 = vstv %s439
        %vm441 = vcmp.lt.s32.totalorder %v440, %v255
        %v442 = vsel %vm441, 1, 0
        %443 = vset.pattern.permute.xlu0 0
        %444 = vperm.xlu0 %443, %v442
        %v445 = vpop.permute.xlu0 %444
        %vm446 = vcmp.eq.s32.totalorder %v445, 1
        %v447 = vsel %vm446, %v438, %v362
        %v448 = vsel %vm446, %v432, %v363
        %s449 = scalar_lea.vmem %s220, 8 [#allocation4]
        %v450 = vld [vmem:[%s449] sm:$0xf]
        %v451 = vunpack.c.l.bf16 %v450
        %v452 = vpack.c.bf16 %v447, %v447
        %454 = vrot.lane.b32.xlu0 %v452, 32
        %v455 = vpop.permute.xlu0 %454
        %v457 = vsel %vm278, %v455, 0
        %459 = vmatprep.subr.bf16.mxu0 0
        %460 = vmatpush1.bf16.msra.mxu0 %v274
        %461 = vmatprep.subr.bf16.mxu0 0
        %462 = vmatpush1.bf16.msra.mxu0 %v275
        %463 = vmatprep.subr.bf16.mxu0 0
        %464 = vmatpush1.bf16.msra.mxu0 0
        %465 = vmatprep.subr.bf16.mxu0 0
        %466 = vmatpush1.bf16.msra.mxu0 0
        %467 = vmatprep.subr.bf16.mxu0 0
        %468 = vmatpush1.bf16.msra.mxu0 0
        %469 = vmatprep.subr.bf16.mxu0 0
        %470 = vmatpush1.bf16.msra.mxu0 0
        %471 = vmatprep.subr.bf16.mxu0 0
        %472 = vmatpush1.bf16.msra.mxu0 0
        %473 = vmatprep.subr.bf16.mxu0 0
        %474 = vmatpush1.bf16.msra.mxu0 0
        %475 = vmatprep.subr.bf16.mxu0 0
        %476 = vmatpush1.bf16.msra.mxu0 0
        %477 = vmatprep.subr.bf16.mxu0 0
        %478 = vmatpush1.bf16.msra.mxu0 0
        %479 = vmatprep.subr.bf16.mxu0 0
        %480 = vmatpush1.bf16.msra.mxu0 0
        %481 = vmatprep.subr.bf16.mxu0 0
        %482 = vmatpush1.bf16.msra.mxu0 0
        %483 = vmatprep.subr.bf16.mxu0 0
        %484 = vmatpush1.bf16.msra.mxu0 0
        %485 = vmatprep.subr.bf16.mxu0 0
        %486 = vmatpush1.bf16.msra.mxu0 0
        %487 = vmatprep.subr.bf16.mxu0 0
        %488 = vmatpush1.bf16.msra.mxu0 0
        %489 = vmatprep.subr.bf16.mxu0 0
        %490 = vmatpush1.bf16.msra.mxu0 0
        %491 = vmatprep.mubr.bf16.mxu0 0
        %492 = vmatmul.mubr.bf16.gmra.mrb[0].mxu0 %v457
        %v493 = vpop.f32.mrb[0].mxu0
        %v494 = vadd.f32 0.0, %v493
        %v495 = vpop.f32.mrb[0].mxu0
        %v496 = vpop.f32.mrb[0].mxu0
        %v497 = vpop.f32.mrb[0].mxu0
        %498 = vdwg.mxu0
        %v499 = vadd.f32 %v451, %v494
        %v500 = vxor.u32 %v499, 2147483648
        %v501 = vmul.f32 %v500, 1.442695
        %v502 = vpow.pop %v501
        %v503 = vadd.f32 %v502, 1.0
        %v504 = vrcp.pop %v503
        %v505 = vmul.f32 1.0, %v504
        %v506 = vtanh.pop %v499
        %v507 = vmul.f32 %v505, %v448
        %509 = vrot.lane.b32.xlu0 %v506, 64
        %v510 = vpop.permute.xlu0 %509
        %v512 = vmul.f32 %v505, %v510
        %514 = vrot.lane.b32.xlu0 %v512, 32
        %v515 = vpop.permute.xlu0 %514
        %v517 = vadd.f32 %v507, %v515
        %v518 = vtanh.pop %v517
        %520 = vrot.lane.b32.xlu0 %v518, 64
        %v521 = vpop.permute.xlu0 %520
        %v523 = vmul.f32 %v505, %v521
        %s524 = sadd.s32 %s256, 2
        %v525 = vstv %s524
        %vm526 = vcmp.lt.s32.totalorder %v525, %v255
        %v527 = vsel %vm526, 1, 0
        %528 = vset.pattern.permute.xlu0 0
        %529 = vperm.xlu0 %528, %v527
        %v530 = vpop.permute.xlu0 %529
        %vm531 = vcmp.eq.s32.totalorder %v530, 1
        %v532 = vsel %vm531, %v523, %v447
        %v533 = vsel %vm531, %v517, %v448
        %s534 = scalar_lea.vmem %s220, 12 [#allocation4]
        %v535 = vld [vmem:[%s534] sm:$0xf]
        %v536 = vunpack.c.l.bf16 %v535
        %v537 = vpack.c.bf16 %v532, %v532
        %539 = vrot.lane.b32.xlu0 %v537, 32
        %v540 = vpop.permute.xlu0 %539
        %v542 = vsel %vm278, %v540, 0
        %544 = vmatprep.subr.bf16.mxu0 0
        %545 = vmatpush1.bf16.msra.mxu0 %v274
        %546 = vmatprep.subr.bf16.mxu0 0
        %547 = vmatpush1.bf16.msra.mxu0 %v275
        %548 = vmatprep.subr.bf16.mxu0 0
        %549 = vmatpush1.bf16.msra.mxu0 0
        %550 = vmatprep.subr.bf16.mxu0 0
        %551 = vmatpush1.bf16.msra.mxu0 0
        %552 = vmatprep.subr.bf16.mxu0 0
        %553 = vmatpush1.bf16.msra.mxu0 0
        %554 = vmatprep.subr.bf16.mxu0 0
        %555 = vmatpush1.bf16.msra.mxu0 0
        %556 = vmatprep.subr.bf16.mxu0 0
        %557 = vmatpush1.bf16.msra.mxu0 0
        %558 = vmatprep.subr.bf16.mxu0 0
        %559 = vmatpush1.bf16.msra.mxu0 0
        %560 = vmatprep.subr.bf16.mxu0 0
        %561 = vmatpush1.bf16.msra.mxu0 0
        %562 = vmatprep.subr.bf16.mxu0 0
        %563 = vmatpush1.bf16.msra.mxu0 0
        %564 = vmatprep.subr.bf16.mxu0 0
        %565 = vmatpush1.bf16.msra.mxu0 0
        %566 = vmatprep.subr.bf16.mxu0 0
        %567 = vmatpush1.bf16.msra.mxu0 0
        %568 = vmatprep.subr.bf16.mxu0 0
        %569 = vmatpush1.bf16.msra.mxu0 0
        %570 = vmatprep.subr.bf16.mxu0 0
        %571 = vmatpush1.bf16.msra.mxu0 0
        %572 = vmatprep.subr.bf16.mxu0 0
        %573 = vmatpush1.bf16.msra.mxu0 0
        %574 = vmatprep.subr.bf16.mxu0 0
        %575 = vmatpush1.bf16.msra.mxu0 0
        %576 = vmatprep.mubr.bf16.mxu0 0
        %577 = vmatmul.mubr.bf16.gmra.mrb[0].mxu0 %v542
        %v578 = vpop.f32.mrb[0].mxu0
        %v579 = vadd.f32 0.0, %v578
        %v580 = vpop.f32.mrb[0].mxu0
        %v581 = vpop.f32.mrb[0].mxu0
        %v582 = vpop.f32.mrb[0].mxu0
        %583 = vdwg.mxu0
        %v584 = vadd.f32 %v536, %v579
        %v585 = vxor.u32 %v584, 2147483648
        %v586 = vmul.f32 %v585, 1.442695
        %v587 = vpow.pop %v586
        %v588 = vadd.f32 %v587, 1.0
        %v589 = vrcp.pop %v588
        %v590 = vmul.f32 1.0, %v589
        %v591 = vtanh.pop %v584
        %v592 = vmul.f32 %v590, %v533
        %594 = vrot.lane.b32.xlu0 %v591, 64
        %v595 = vpop.permute.xlu0 %594
        %v597 = vmul.f32 %v590, %v595
        %599 = vrot.lane.b32.xlu0 %v597, 32
        %v600 = vpop.permute.xlu0 %599
        %v602 = vadd.f32 %v592, %v600
        %v603 = vtanh.pop %v602
        %605 = vrot.lane.b32.xlu0 %v603, 64
        %v606 = vpop.permute.xlu0 %605
        %v608 = vmul.f32 %v590, %v606
        %s609 = sadd.s32 %s256, 3
        %v610 = vstv %s609
        %vm611 = vcmp.lt.s32.totalorder %v610, %v255
        %v612 = vsel %vm611, 1, 0
        %613 = vset.pattern.permute.xlu0 0
        %614 = vperm.xlu0 %613, %v612
        %v615 = vpop.permute.xlu0 %614
        %vm616 = vcmp.eq.s32.totalorder %v615, 1
        %v617 = vsel %vm616, %v608, %v532
        %v618 = vsel %vm616, %v602, %v533
        %620 = vrot.lane.b32.xlu0 %v617, 32
        %v621 = vpop.permute.xlu0 %620
        %623 = vst.msk [vmem:[#allocation2] sm:$0xff] %vm278, %v621
        %625 = vrot.lane.b32.xlu0 %v618, 96
        %v626 = vpop.permute.xlu0 %625
        %628 = vst.msk [vmem:[#allocation3] sm:$0xff] %vm278, %v626
        %p629 = scmp.eq.s32.totalorder %s21, 1
        // Predicated region
        $region53: #{tpu_custom_call.1} parent=39 // pred_check
          %p630 = pneg %p629
        $region54: #{tpu_custom_call.1} parent=39 // pred_check_branch
          %632 = sbr.rel (%p630) target = $region56
        $region55: #{tpu_custom_call.1} parent=39 // pred_region
          %v633 = vpack.c.bf16 %v617, %v617
          %v634 = vld [vmem:[#allocation7] sm:$0xf]
          %v635 = vld [vmem:[#allocation7 + $0x4] sm:$0xf]
          %v636 = vld [vmem:[#allocation7 + $0x8] sm:$0xf]
          %v637 = vld [vmem:[#allocation7 + $0xc] sm:$0xf]
          %v638 = vld [vmem:[%s4] sm:$0x1]
          %v640 = vlaneseq
          %v641 = vshrl.u32 %v640, 7
          %v642 = vsub.s32 0, %v641
          %v643 = vrot.slane %v638, %v642
          %646 = vrot.lane.b32.xlu0 %v633, 32
          %v647 = vpop.permute.xlu0 %646
          %v652 = vunpack.c.l.b16 %v634
          %v653 = vunpack.c.l.b16 %v635
          %v654 = vunpack.c.l.b16 %v636
          %v655 = vunpack.c.l.b16 %v637
          %v656 = vpack.c.b16 %v653, %v652
          %v657 = vpack.c.b16 %v655, %v654
          %v661 = vsel %vm278, %v647, 0
          %663 = vmatprep.subr.bf16.mxu0 0
          %664 = vmatpush1.bf16.msra.mxu0 %v656
          %665 = vmatprep.subr.bf16.mxu0 0
          %666 = vmatpush1.bf16.msra.mxu0 %v657
          %667 = vmatprep.subr.bf16.mxu0 0
          %668 = vmatpush1.bf16.msra.mxu0 0
          %669 = vmatprep.subr.bf16.mxu0 0
          %670 = vmatpush1.bf16.msra.mxu0 0
          %671 = vmatprep.subr.bf16.mxu0 0
          %672 = vmatpush1.bf16.msra.mxu0 0
          %673 = vmatprep.subr.bf16.mxu0 0
          %674 = vmatpush1.bf16.msra.mxu0 0
          %675 = vmatprep.subr.bf16.mxu0 0
          %676 = vmatpush1.bf16.msra.mxu0 0
          %677 = vmatprep.subr.bf16.mxu0 0
          %678 = vmatpush1.bf16.msra.mxu0 0
          %679 = vmatprep.subr.bf16.mxu0 0
          %680 = vmatpush1.bf16.msra.mxu0 0
          %681 = vmatprep.subr.bf16.mxu0 0
          %682 = vmatpush1.bf16.msra.mxu0 0
          %683 = vmatprep.subr.bf16.mxu0 0
          %684 = vmatpush1.bf16.msra.mxu0 0
          %685 = vmatprep.subr.bf16.mxu0 0
          %686 = vmatpush1.bf16.msra.mxu0 0
          %687 = vmatprep.subr.bf16.mxu0 0
          %688 = vmatpush1.bf16.msra.mxu0 0
          %689 = vmatprep.subr.bf16.mxu0 0
          %690 = vmatpush1.bf16.msra.mxu0 0
          %691 = vmatprep.subr.bf16.mxu0 0
          %692 = vmatpush1.bf16.msra.mxu0 0
          %693 = vmatprep.subr.bf16.mxu0 0
          %694 = vmatpush1.bf16.msra.mxu0 0
          %695 = vmatprep.mubr.bf16.mxu0 0
          %696 = vmatmul.mubr.bf16.gmra.mrb[0].mxu0 %v661
          %v697 = vpop.f32.mrb[0].mxu0
          %v698 = vadd.f32 %v643, %v697
          %v699 = vpop.f32.mrb[0].mxu0
          %v700 = vpop.f32.mrb[0].mxu0
          %v701 = vpop.f32.mrb[0].mxu0
          %702 = vdwg.mxu0
          %703 = vst [vmem:[#allocation9] sm:$0xff] %v698
        $region56: #{tpu_custom_call.1} parent=39 // pred_fallthru
          _
        // Predicated region
        $region57: #{tpu_custom_call.1} parent=39 // pred_check
          %p704 = pneg %p144
        $region58: #{tpu_custom_call.1} parent=39 // pred_check_branch
          %706 = sbr.rel (%p704) target = $region60
        $region59: #{tpu_custom_call.1} parent=39 // pred_region
          %s708 = ssub.s32 128, 128
          %709 = vsyncadd [#allocation6], %s708
          %s711 = sshll.u32 [#allocation9], 4
          %s712 = int_to_ptr.vmem [resolvable:$true] %s711
          %714 = dma.vmem_to_hbm [thread:$0]  %s712, 128, %s5, [#allocation6]
        $region60: #{tpu_custom_call.1} parent=39 // pred_fallthru
          _
        // Predicated region
        $region61: #{tpu_custom_call.1} parent=39 // pred_check
          %p715 = pneg %p144
        $region62: #{tpu_custom_call.1} parent=39 // pred_check_branch
          %717 = sbr.rel (%p715) target = $region64
        $region63: #{tpu_custom_call.1} parent=39 // pred_region
          %718 = dma.done [#allocation6], 128
        $region64: #{tpu_custom_call.1} parent=39 // pred_fallthru
          _
      $region40: #{tpu_custom_call.1} parent=5 // pred_fallthru
        _
      %p719 = scmp.le.s32.totalorder 2, %s16
      // Predicated region
      $region65: #{tpu_custom_call.1} parent=5 // pred_check
        %p720 = pneg %p719
      $region66: #{tpu_custom_call.1} parent=5 // pred_check_branch
        %722 = sbr.rel (%p720) target = $region68
      $region67: #{tpu_custom_call.1} parent=5 // pred_region
        %s723 = ssub.s32 %s16, 2
      $region68: #{tpu_custom_call.1} parent=5 // pred_fallthru
        _
    $region6: #{tpu_custom_call.1} parent=1 // loop_footer
      %s20 = sadd.s32 1, %s16
    $region7: #{tpu_custom_call.1} parent=1 // loop_footer_branch
      %15 = sbr.rel target = $region3
    $region8: #{tpu_custom_call.1} parent=1 // loop_exit
      _
    %724 = vsyncpa [#allocation5], 1
    %s725 = scalar_lea.sflag [#allocation5], 1
    %726 = vsyncpa %s725, 1
    %727 = vsyncpa [#allocation8], 1
    %728 = vsyncpa [#allocation6], 1
    %s729 = scalar_lea.sflag [#allocation6], 1
    %730 = vsyncpa %s729, 1

</llo_original>
